<compile_context>
chip_gen: v5e
topology: v5e:2x2
jax: 0.10.0
libtpu: 0.0.40
codegen_flags: <defaults>
</compile_context>

<pallas_src>
import jax
import jax.numpy as jnp
from jax.experimental import pallas as pl
from jax.experimental.pallas import tpu as pltpu


_DEFAULT_VMEM_LIMIT = 48 * 1024 * 1024  # fits v7x (64 MiB) with headroom; fine on v5e/v6e


def _gen_pool_kernel(x_ref, w1_ref, b1_ref, w2_ref, b2_ref, out_ref):
    # x_ref  : (block_b, S, D)   token embeddings for this batch tile
    # w1_ref : (D, H*D)          fc1 weights of all heads, concatenated along N
    # b1_ref : (1, H*D)          fc1 biases (f32)
    # w2_ref : (H, D, D)         fc2 weights, per head (no block-diagonal padding)
    # b2_ref : (H, 1, D)         fc2 biases (f32)
    # out_ref: (block_b, H*D)    pooled sentence embeddings, lane-dense
    bt, S, D = x_ref.shape
    H = w2_ref.shape[0]

    x = x_ref[...]                              # storage dtype (f32 or bf16)
    x_f32 = x.astype(jnp.float32)               # f32 copy for the weighted sum

    # fc1 for all heads at once: (bt*S, D) @ (D, H*D) — one packed MXU matmul.
    x2d = x.reshape(bt * S, D)
    f = jnp.dot(x2d, w1_ref[...], preferred_element_type=jnp.float32)
    f = jnp.maximum(f + b1_ref[...], 0.0)       # relu, f32

    # fc2 per head (H small -> static unroll): H x fewer FLOPs than the old
    # block-diagonal formulation, and only (bt, S, D) intermediates are live.
    for h in range(H):
        f_h = f[:, h * D:(h + 1) * D]           # lane-aligned slice when D % 128 == 0
        logits = jnp.dot(f_h.astype(w2_ref.dtype), w2_ref[h],
                         preferred_element_type=jnp.float32)
        logits = (logits + b2_ref[h]).reshape(bt, S, D)

        # Softmax over the sequence fused with the weighted sum — no attention
        # tensor beyond `e` is materialized, and no x replication across heads.
        m = jnp.max(logits, axis=1, keepdims=True)    # (bt, 1, D)
        e = jnp.exp(logits - m)                       # (bt, S, D)
        num = jnp.sum(e * x_f32, axis=1)              # (bt, D)
        den = jnp.sum(e, axis=1)                      # (bt, D)
        # Exact normalization (the approximate reciprocal caused the mismatch).
        out_ref[:, h * D:(h + 1) * D] = (num / den).astype(out_ref.dtype)


def _pick_block_b(B, S, D, H, x_bytes_per_el, w_bytes_per_el, vmem_limit_bytes):
    """Largest batch tile whose live footprint (including resident weights and
    the post-fc1 / per-head logits buffers) fits the VMEM limit, preferring
    multiples of 8 so output stores are unmasked and block_b*S fills the MXU."""
    HD = H * D
    # Resident packed weights + biases (double-buffered by the default pipeline).
    weight_bytes = 2 * ((D * HD + H * D * D) * w_bytes_per_el + 2 * HD * 4)
    # Live footprint per batch row inside the kernel.
    per_row = (2 * S * D * x_bytes_per_el   # x tile, double-buffered
               + 4 * S * D                  # x_f32 copy
               + 4 * S * HD                 # f (post-relu fc1 output, f32)
               + 2 * 4 * S * D              # logits + exp for the live head (f32)
               + 2 * 4 * HD)                # output tile, double-buffered
    budget = vmem_limit_bytes - weight_bytes - (4 << 20)   # fixed headroom
    cap = max(1, budget // per_row)
    if B <= cap:
        return B                            # full-dim block: always layout-legal
    bb = (min(cap, B) // 8) * 8
    while bb >= 8:                          # sublane-aligned divisors only
        if B % bb == 0:
            return bb
        bb -= 8
    for bb in range(min(int(cap), B), 0, -1):   # fallback for awkward B
        if B % bb == 0:
            return bb
    return B


def pack_generalized_pooling_params(w1, b1, w2, b2, *, matmul_dtype=jnp.bfloat16):
    """One-time parameter packing — call at model load, not per forward.

    w1/w2: (H, D, D) stored so that y = x @ W + b (already transposed w.r.t.
    nn.Linear's (out, in)); b1/b2: (H, D)."""
    H, D, _ = w1.shape
    HD = H * D
    w1_cat = jnp.transpose(w1, (1, 0, 2)).reshape(D, HD)   # (D, H*D), single XLA op
    b1_r = b1.reshape(1, HD).astype(jnp.float32)
    w2_p = w2                                              # (H, D, D) used per head
    b2_r = b2.reshape(H, 1, D).astype(jnp.float32)
    if matmul_dtype is not None:
        w1_cat = w1_cat.astype(matmul_dtype)
        w2_p = w2_p.astype(matmul_dtype)
    return w1_cat, b1_r, w2_p, b2_r


def generalized_multihead_pooling_packed(x, w1_cat, b1_r, w2_p, b2_r, *,
                                         block_b=None,
                                         vmem_limit_bytes=_DEFAULT_VMEM_LIMIT):
    """x: (B, S, D); packed params from pack_generalized_pooling_params.
    Returns (B, H*D) in x.dtype."""
    B, S, D = x.shape
    H = w2_p.shape[0]
    HD = H * D
    assert w1_cat.shape == (D, HD), (w1_cat.shape, D, HD)

    # Matmul operands follow the packed-weight dtype (bf16 by default).
    x_in = x if x.dtype == w1_cat.dtype else x.astype(w1_cat.dtype)

    if block_b is None:
        block_b = _pick_block_b(B, S, D, H,
                                jnp.dtype(x_in.dtype).itemsize,
                                jnp.dtype(w1_cat.dtype).itemsize,
                                vmem_limit_bytes)
    assert B % block_b == 0, (B, block_b)
    grid = (B // block_b,)

    # Advisory cost estimate for XLA's scheduler around the custom call.
    flops = 2 * B * S * D * HD + 2 * B * S * H * D * D + 8 * B * S * HD
    bytes_accessed = (x_in.size * x_in.dtype.itemsize
                      + w1_cat.size * w1_cat.dtype.itemsize
                      + w2_p.size * w2_p.dtype.itemsize
                      + (b1_r.size + b2_r.size) * 4
                      + B * HD * x.dtype.itemsize)
    cost = pl.CostEstimate(flops=int(flops),
                           transcendentals=int(B * S * HD),
                           bytes_accessed=int(bytes_accessed))

    # TODO(synk): for tiny-batch v7x workloads (B // block_b < 2) a second
    # "parallel" head grid axis would keep both TensorCores busy.
    return pl.pallas_call(
        _gen_pool_kernel,
        out_shape=jax.ShapeDtypeStruct((B, HD), x.dtype),
        grid=grid,
        in_specs=[
            # x: streamed batch tiles (last two dims are full extents -> layout-legal)
            pl.BlockSpec((block_b, S, D), lambda b: (b, 0, 0)),
            # packed weights/biases: constant index_map -> resident, no re-DMA per step
            pl.BlockSpec((D, HD), lambda b: (0, 0)),
            pl.BlockSpec((1, HD), lambda b: (0, 0)),
            pl.BlockSpec((H, D, D), lambda b: (0, 0, 0)),
            pl.BlockSpec((H, 1, D), lambda b: (0, 0, 0)),
        ],
        # lane-dense output: (B, H*D) written directly, no HBM transpose afterwards
        out_specs=pl.BlockSpec((block_b, HD), lambda b: (b, 0)),
        compiler_params=pltpu.CompilerParams(
            dimension_semantics=("parallel",),        # batch tiles shard across TCs
            vmem_limit_bytes=int(vmem_limit_bytes),
        ),
        cost_estimate=cost,
    )(x_in, w1_cat, b1_r, w2_p, b2_r)


def generalized_multihead_pooling(x, w1, b1, w2, b2, *, matmul_dtype=jnp.bfloat16,
                                  block_b=None, vmem_limit_bytes=_DEFAULT_VMEM_LIMIT):
    """Convenience wrapper: pack params then run the kernel.
    For repeated forward calls, pack once with pack_generalized_pooling_params
    and call generalized_multihead_pooling_packed directly."""
    packed = pack_generalized_pooling_params(w1, b1, w2, b2, matmul_dtype=matmul_dtype)
    return generalized_multihead_pooling_packed(x, *packed, block_b=block_b,
                                                vmem_limit_bytes=vmem_limit_bytes)


def _reference(x, w1, b1, w2, b2):
    """Pure-JAX reference mirroring the PyTorch module (per-head loop), f32."""
    hp = jax.lax.Precision.HIGHEST
    outs = []
    for h in range(w1.shape[0]):
        f = jax.nn.relu(jnp.dot(x, w1[h], precision=hp) + b1[h])
        attn = jax.nn.softmax(jnp.dot(f, w2[h], precision=hp) + b2[h], axis=-2)
        outs.append(jnp.sum(attn * x, axis=-2))
    return jnp.concatenate(outs, axis=-1)


if __name__ == "__main__":
    B, S, D, H = 2, 8, 32, 2   # batch, seq, word_embedding_dimension, num_heads

    key = jax.random.PRNGKey(0)
    kx, kw1, kb1, kw2, kb2 = jax.random.split(key, 5)

    x = jax.random.normal(kx, (B, S, D), dtype=jnp.float32)
    scale = 1.0 / jnp.sqrt(jnp.float32(D))
    w1 = jax.random.uniform(kw1, (H, D, D), jnp.float32, -scale, scale)
    b1 = jax.random.uniform(kb1, (H, D), jnp.float32, -scale, scale)
    w2 = jax.random.uniform(kw2, (H, D, D), jnp.float32, -scale, scale)
    b2 = jax.random.uniform(kb2, (H, D), jnp.float32, -scale, scale)

    ref = _reference(x, w1, b1, w2, b2)

    # Full-precision path (f32 MXU operands, exact softmax normalization).
    out_f32 = generalized_multihead_pooling(x, w1, b1, w2, b2, matmul_dtype=None)
    jax.block_until_ready(out_f32)
    assert out_f32.shape == (B, H * D), out_f32.shape
    assert jnp.allclose(out_f32, ref, atol=2e-3, rtol=2e-3), "f32 mismatch vs reference"

    # Default path (bf16 MXU operands, f32 epilogue) — looser tolerance for bf16.
    out_bf16 = generalized_multihead_pooling(x, w1, b1, w2, b2)
    jax.block_until_ready(out_bf16)
    assert out_bf16.shape == (B, H * D), out_bf16.shape
    assert jnp.allclose(out_bf16, ref, atol=5e-2, rtol=5e-2), "bf16 mismatch vs reference"

    # TODO(synk): the per-head 'sentence_attention' dict entry of the inner
    # GeneralizedPooling module is not produced (the multi-head module only
    # returns the concatenated sentence_embedding).

    print("KERNEL_OK")
</pallas_src>

<mosaic_0001>
module attributes {stable_mosaic.version = 11 : i64} {
  func.func @_gen_pool_kernel(%arg0: i32, %arg1: memref<2x8x32xf32, #tpu.memory_space<vmem>>, %arg2: memref<32x64xf32, #tpu.memory_space<vmem>>, %arg3: memref<1x64xf32, #tpu.memory_space<vmem>>, %arg4: memref<2x32x32xf32, #tpu.memory_space<vmem>>, %arg5: memref<2x1x32xf32, #tpu.memory_space<vmem>>, %arg6: memref<2x64xf32, #tpu.memory_space<vmem>>) attributes {dimension_semantics = [#tpu.dimension_semantics<parallel>], iteration_bounds = array<i64: 1>, scalar_prefetch = 0 : i64, scratch_operands = 0 : i64, tpu.core_type = #tpu.core_type<tc>, window_params = [{transform_indices = @transform_0, window_bounds = array<i64: 2, 8, 32>}, {pipeline_mode = #tpu.pipeline_mode<synchronous>, transform_indices = @transform_1, window_bounds = array<i64: 32, 64>}, {pipeline_mode = #tpu.pipeline_mode<synchronous>, transform_indices = @transform_2, window_bounds = array<i64: 1, 64>}, {pipeline_mode = #tpu.pipeline_mode<synchronous>, transform_indices = @transform_3, window_bounds = array<i64: 2, 32, 32>}, {pipeline_mode = #tpu.pipeline_mode<synchronous>, transform_indices = @transform_4, window_bounds = array<i64: 2, 1, 32>}, {transform_indices = @transform_5, window_bounds = array<i64: 2, 64>}]} {
    %c0 = arith.constant 0 : index
    %c0_0 = arith.constant 0 : index
    %c0_1 = arith.constant 0 : index
    %0 = vector.load %arg1[%c0, %c0_0, %c0_1] : memref<2x8x32xf32, #tpu.memory_space<vmem>>, vector<2x8x32xf32>
    %1 = vector.shape_cast %0 : vector<2x8x32xf32> to vector<16x32xf32>
    %c0_2 = arith.constant 0 : index
    %c0_3 = arith.constant 0 : index
    %2 = vector.load %arg2[%c0_2, %c0_3] : memref<32x64xf32, #tpu.memory_space<vmem>>, vector<32x64xf32>
    %cst = arith.constant dense<0.000000e+00> : vector<16x64xf32>
    %3 = tpu.matmul %1, %2, %cst {dimension_numbers = #tpu.dot_dimension_numbers<[1], [0], [0], [1], [0, 0, 1, 1], [], []>} : vector<16x32xf32>, vector<32x64xf32>, vector<16x64xf32> -> vector<16x64xf32>
    %c0_4 = arith.constant 0 : index
    %c0_5 = arith.constant 0 : index
    %4 = vector.load %arg3[%c0_4, %c0_5] : memref<1x64xf32, #tpu.memory_space<vmem>>, vector<1x64xf32>
    %5 = vector.broadcast %4 : vector<1x64xf32> to vector<16x64xf32>
    %6 = arith.addf %3, %5 : vector<16x64xf32>
    %cst_6 = arith.constant 0.000000e+00 : f32
    %7 = vector.broadcast %cst_6 : f32 to vector<16x64xf32>
    %8 = arith.maximumf %6, %7 : vector<16x64xf32>
    %9 = vector.extract_strided_slice %8 {offsets = [0, 0], sizes = [16, 32], strides = [1, 1]} : vector<16x64xf32> to vector<16x32xf32>
    %c0_7 = arith.constant 0 : index
    %c0_8 = arith.constant 0 : index
    %c0_9 = arith.constant 0 : index
    %10 = vector.load %arg4[%c0_7, %c0_8, %c0_9] : memref<2x32x32xf32, #tpu.memory_space<vmem>>, vector<1x32x32xf32>
    %11 = vector.shape_cast %10 : vector<1x32x32xf32> to vector<32x32xf32>
    %cst_10 = arith.constant dense<0.000000e+00> : vector<16x32xf32>
    %12 = tpu.matmul %9, %11, %cst_10 {dimension_numbers = #tpu.dot_dimension_numbers<[1], [0], [0], [1], [0, 0, 1, 1], [], []>} : vector<16x32xf32>, vector<32x32xf32>, vector<16x32xf32> -> vector<16x32xf32>
    %c0_11 = arith.constant 0 : index
    %c0_12 = arith.constant 0 : index
    %c0_13 = arith.constant 0 : index
    %13 = vector.load %arg5[%c0_11, %c0_12, %c0_13] : memref<2x1x32xf32, #tpu.memory_space<vmem>>, vector<1x1x32xf32>
    %14 = vector.shape_cast %13 : vector<1x1x32xf32> to vector<1x32xf32>
    %15 = vector.broadcast %14 : vector<1x32xf32> to vector<16x32xf32>
    %16 = arith.addf %12, %15 : vector<16x32xf32>
    %17 = vector.shape_cast %16 : vector<16x32xf32> to vector<2x8x32xf32>
    %cst_14 = arith.constant dense<0xFF800000> : vector<2x32xf32>
    %18 = vector.multi_reduction <maximumf>, %17, %cst_14 [1] : vector<2x8x32xf32> to vector<2x32xf32>
    %19 = vector.shape_cast %18 : vector<2x32xf32> to vector<2x1x32xf32>
    %20 = vector.broadcast %19 : vector<2x1x32xf32> to vector<2x8x32xf32>
    %21 = arith.subf %17, %20 : vector<2x8x32xf32>
    %22 = math.exp %21 : vector<2x8x32xf32>
    %23 = arith.mulf %22, %0 : vector<2x8x32xf32>
    %cst_15 = arith.constant dense<0.000000e+00> : vector<2x32xf32>
    %24 = vector.multi_reduction <add>, %23, %cst_15 [1] : vector<2x8x32xf32> to vector<2x32xf32>
    %cst_16 = arith.constant dense<0.000000e+00> : vector<2x32xf32>
    %25 = vector.multi_reduction <add>, %22, %cst_16 [1] : vector<2x8x32xf32> to vector<2x32xf32>
    %26 = arith.divf %24, %25 : vector<2x32xf32>
    %c0_17 = arith.constant 0 : index
    %c0_18 = arith.constant 0 : index
    %27 = vector.load %arg6[%c0_17, %c0_18] : memref<2x64xf32, #tpu.memory_space<vmem>>, vector<2x32xf32>
    tpu.vector_store %arg6[%c0_17, %c0_18], %26 {strides = array<i32>} : memref<2x64xf32, #tpu.memory_space<vmem>>, vector<2x32xf32>,
    %28 = vector.extract_strided_slice %8 {offsets = [0, 32], sizes = [16, 32], strides = [1, 1]} : vector<16x64xf32> to vector<16x32xf32>
    %c1 = arith.constant 1 : index
    %c0_19 = arith.constant 0 : index
    %c0_20 = arith.constant 0 : index
    %29 = vector.load %arg4[%c1, %c0_19, %c0_20] : memref<2x32x32xf32, #tpu.memory_space<vmem>>, vector<1x32x32xf32>
    %30 = vector.shape_cast %29 : vector<1x32x32xf32> to vector<32x32xf32>
    %cst_21 = arith.constant dense<0.000000e+00> : vector<16x32xf32>
    %31 = tpu.matmul %28, %30, %cst_21 {dimension_numbers = #tpu.dot_dimension_numbers<[1], [0], [0], [1], [0, 0, 1, 1], [], []>} : vector<16x32xf32>, vector<32x32xf32>, vector<16x32xf32> -> vector<16x32xf32>
    %c1_22 = arith.constant 1 : index
    %c0_23 = arith.constant 0 : index
    %c0_24 = arith.constant 0 : index
    %32 = vector.load %arg5[%c1_22, %c0_23, %c0_24] : memref<2x1x32xf32, #tpu.memory_space<vmem>>, vector<1x1x32xf32>
    %33 = vector.shape_cast %32 : vector<1x1x32xf32> to vector<1x32xf32>
    %34 = vector.broadcast %33 : vector<1x32xf32> to vector<16x32xf32>
    %35 = arith.addf %31, %34 : vector<16x32xf32>
    %36 = vector.shape_cast %35 : vector<16x32xf32> to vector<2x8x32xf32>
    %cst_25 = arith.constant dense<0xFF800000> : vector<2x32xf32>
    %37 = vector.multi_reduction <maximumf>, %36, %cst_25 [1] : vector<2x8x32xf32> to vector<2x32xf32>
    %38 = vector.shape_cast %37 : vector<2x32xf32> to vector<2x1x32xf32>
    %39 = vector.broadcast %38 : vector<2x1x32xf32> to vector<2x8x32xf32>
    %40 = arith.subf %36, %39 : vector<2x8x32xf32>
    %41 = math.exp %40 : vector<2x8x32xf32>
    %42 = arith.mulf %41, %0 : vector<2x8x32xf32>
    %cst_26 = arith.constant dense<0.000000e+00> : vector<2x32xf32>
    %43 = vector.multi_reduction <add>, %42, %cst_26 [1] : vector<2x8x32xf32> to vector<2x32xf32>
    %cst_27 = arith.constant dense<0.000000e+00> : vector<2x32xf32>
    %44 = vector.multi_reduction <add>, %41, %cst_27 [1] : vector<2x8x32xf32> to vector<2x32xf32>
    %45 = arith.divf %43, %44 : vector<2x32xf32>
    %c0_28 = arith.constant 0 : index
    %c32 = arith.constant 32 : index
    %46 = vector.load %arg6[%c0_28, %c32] : memref<2x64xf32, #tpu.memory_space<vmem>>, vector<2x32xf32>
    tpu.vector_store %arg6[%c0_28, %c32], %45 {strides = array<i32>} : memref<2x64xf32, #tpu.memory_space<vmem>>, vector<2x32xf32>,
    return
  }
  func.func @transform_0(%arg0: i32) -> (i32, i32, i32) {
    %c0_i32 = arith.constant 0 : i32
    %c0_i32_0 = arith.constant 0 : i32
    %c0_i32_1 = arith.constant 0 : i32
    return %arg0, %c0_i32, %c0_i32_0 : i32, i32, i32
  }
  func.func @transform_1(%arg0: i32) -> (i32, i32) {
    %c0_i32 = arith.constant 0 : i32
    %c0_i32_0 = arith.constant 0 : i32
    %c0_i32_1 = arith.constant 0 : i32
    return %c0_i32, %c0_i32_0 : i32, i32
  }
  func.func @transform_2(%arg0: i32) -> (i32, i32) {
    %c0_i32 = arith.constant 0 : i32
    %c0_i32_0 = arith.constant 0 : i32
    %c0_i32_1 = arith.constant 0 : i32
    return %c0_i32, %c0_i32_0 : i32, i32
  }
  func.func @transform_3(%arg0: i32) -> (i32, i32, i32) {
    %c0_i32 = arith.constant 0 : i32
    %c0_i32_0 = arith.constant 0 : i32
    %c0_i32_1 = arith.constant 0 : i32
    %c0_i32_2 = arith.constant 0 : i32
    return %c0_i32, %c0_i32_0, %c0_i32_1 : i32, i32, i32
  }
  func.func @transform_4(%arg0: i32) -> (i32, i32, i32) {
    %c0_i32 = arith.constant 0 : i32
    %c0_i32_0 = arith.constant 0 : i32
    %c0_i32_1 = arith.constant 0 : i32
    %c0_i32_2 = arith.constant 0 : i32
    return %c0_i32, %c0_i32_0, %c0_i32_1 : i32, i32, i32
  }
  func.func @transform_5(%arg0: i32) -> (i32, i32) {
    %c0_i32 = arith.constant 0 : i32
    %c0_i32_0 = arith.constant 0 : i32
    return %arg0, %c0_i32 : i32, i32
  }
}

</mosaic_0001>

<llo_original>
// kernel: tpu_custom_call.1
$region0: #{tpu_custom_call.1}
  #allocation0 [shape = 'u32[]', space=smem, size = 0x4, offset = 0x4, fixed_abs, tag = 'smem constant byte address 0x4 - core index']
  #allocation1 [shape = 'u32[72,128]{1,0:T(1,128)}', space=vmem, size = 0x9000, scoped, tag = 'internal scratch']
  %s0 = inlined_call_operand.hbm [shape: f32[2,8,32], index: 0, kind: input, shape index: {}]
  %s1 = inlined_call_operand.hbm [shape: f32[32,64], index: 1, kind: input, shape index: {}]
  %s2 = inlined_call_operand.vmem [shape: f32[1,64], index: 2, kind: input, shape index: {}]
  %s3 = inlined_call_operand.hbm [shape: f32[2,32,32], index: 3, kind: input, shape index: {}]
  %s4 = inlined_call_operand.vmem [shape: f32[2,1,32], index: 4, kind: input, shape index: {}]
  %s5 = inlined_call_operand.hbm [shape: f32[2,64], index: 5, kind: output, shape index: {}]
  %s6 = sld [smem:[#allocation0]]
  $region42: #{tpu_custom_call.1} parent=0
    _
  %s8 = ssub.s32 1, %s6
  %s9 = scalar_select 0, %s8, %s6
  $region1: #{tpu_custom_call.1} parent=0
    #allocation2 [shape = 'u8[8192]{0}', space=vmem, size = 0x2000, scoped, tag = 'input window, operand 0, single buffered']
    #allocation3 [shape = 's32[1]{0}', space=sflag, size = 0x4, scoped, tag = 'scoped memory for tpu_custom_call.1']
    #allocation4 [shape = 's32[1]{0}', space=sflag, size = 0x4, scoped, tag = 'scoped memory for tpu_custom_call.1']
    #allocation5 [shape = 'u8[16384]{0}', space=vmem, size = 0x4000, scoped, tag = 'input window, operand 1, single buffered']
    #allocation6 [shape = 's32[1]{0}', space=sflag, size = 0x4, scoped, tag = 'scoped memory for tpu_custom_call.1']
    #allocation7 [shape = 'u8[32768]{0}', space=vmem, size = 0x8000, scoped, tag = 'input window, operand 3, single buffered']
    #allocation8 [shape = 'u8[1024]{0}', space=vmem, size = 0x400, scoped, tag = 'output window, operand 0, single buffered']
    %10 = vsyncpa [#allocation3], 0
    %11 = vsyncpa [#allocation6], 0
    %12 = vsyncpa [#allocation4], 0
    // Predicated region
    $region2: #{tpu_custom_call.1} parent=1 // pred_check
      _
    $region3: #{tpu_custom_call.1} parent=1 // pred_check_branch
      %14 = sbr.rel (0) target = $region5
    $region4: #{tpu_custom_call.1} parent=1 // pred_region
      %16 = vsyncadd [#allocation3], 0
      %s17 = sshll.u32 %s0, 4
      %s18 = int_to_ptr.hbm [resolvable:$true] %s17
      %s19 = sshll.u32 [#allocation2], 4
      %s20 = int_to_ptr.vmem [resolvable:$true] %s19
      %25 = dma.hbm_to_vmem [thread:$0]  %s18, 256, %s20, [#allocation3], 128, 128, 8
    $region5: #{tpu_custom_call.1} parent=1 // pred_fallthru
      _
    // Predicated region
    $region6: #{tpu_custom_call.1} parent=1 // pred_check
      _
    $region7: #{tpu_custom_call.1} parent=1 // pred_check_branch
      %27 = sbr.rel (0) target = $region9
    $region8: #{tpu_custom_call.1} parent=1 // pred_region
      %29 = vsyncadd [#allocation6], 0
      %s30 = sshll.u32 %s1, 4
      %s31 = int_to_ptr.hbm [resolvable:$true] %s30
      %s32 = sshll.u32 [#allocation5], 4
      %s33 = int_to_ptr.vmem [resolvable:$true] %s32
      %38 = dma.hbm_to_vmem [thread:$0]  %s31, 512, %s33, [#allocation6], 128, 128, 8
    $region9: #{tpu_custom_call.1} parent=1 // pred_fallthru
      _
    // Predicated region
    $region10: #{tpu_custom_call.1} parent=1 // pred_check
      _
    $region11: #{tpu_custom_call.1} parent=1 // pred_check_branch
      %40 = sbr.rel (0) target = $region13
    $region12: #{tpu_custom_call.1} parent=1 // pred_region
      _
    $region13: #{tpu_custom_call.1} parent=1 // pred_fallthru
      _
    // Predicated region
    $region14: #{tpu_custom_call.1} parent=1 // pred_check
      _
    $region15: #{tpu_custom_call.1} parent=1 // pred_check_branch
      %42 = sbr.rel (0) target = $region17
    $region16: #{tpu_custom_call.1} parent=1 // pred_region
      %44 = vsyncadd [#allocation6], 0
      %s45 = sshll.u32 %s3, 4
      %s46 = int_to_ptr.hbm [resolvable:$true] %s45
      %s47 = sshll.u32 [#allocation7], 4
      %s48 = int_to_ptr.vmem [resolvable:$true] %s47
      %53 = dma.hbm_to_vmem [thread:$0]  %s46, 1024, %s48, [#allocation6], 128, 128, 8
    $region17: #{tpu_custom_call.1} parent=1 // pred_fallthru
      _
    // Predicated region
    $region18: #{tpu_custom_call.1} parent=1 // pred_check
      _
    $region19: #{tpu_custom_call.1} parent=1 // pred_check_branch
      %55 = sbr.rel (0) target = $region21
    $region20: #{tpu_custom_call.1} parent=1 // pred_region
      _
    $region21: #{tpu_custom_call.1} parent=1 // pred_fallthru
      _
    // Predicated region
    $region22: #{tpu_custom_call.1} parent=1 // pred_check
      _
    $region23: #{tpu_custom_call.1} parent=1 // pred_check_branch
      %57 = sbr.rel (0) target = $region25
    $region24: #{tpu_custom_call.1} parent=1 // pred_region
      %59 = dma.done [#allocation3], 256
    $region25: #{tpu_custom_call.1} parent=1 // pred_fallthru
      _
    // Predicated region
    $region26: #{tpu_custom_call.1} parent=1 // pred_check
      _
    $region27: #{tpu_custom_call.1} parent=1 // pred_check_branch
      %61 = sbr.rel (0) target = $region29
    $region28: #{tpu_custom_call.1} parent=1 // pred_region
      %63 = dma.done [#allocation6], 512
    $region29: #{tpu_custom_call.1} parent=1 // pred_fallthru
      _
    // Predicated region
    $region30: #{tpu_custom_call.1} parent=1 // pred_check
      _
    $region31: #{tpu_custom_call.1} parent=1 // pred_check_branch
      %65 = sbr.rel (0) target = $region33
    $region32: #{tpu_custom_call.1} parent=1 // pred_region
      %67 = dma.done [#allocation6], 1024
    $region33: #{tpu_custom_call.1} parent=1 // pred_fallthru
      _
    %v68 = vld [vmem:[#allocation2] sm:$0xff]
    %v69 = vld [vmem:[#allocation2 + $0x8] sm:$0xff]
    %v70 = vld [vmem:[#allocation5] sm:$0xff]
    %v71 = vld [vmem:[#allocation5 + $0x8] sm:$0xff]
    %v72 = vld [vmem:[#allocation5 + $0x10] sm:$0xff]
    %v73 = vld [vmem:[#allocation5 + $0x18] sm:$0xff]
    %v74 = vld [vmem:[%s2] sm:$0x1]
    %v76 = vperm.slane %v74, 0
    %vm78 = vcmask 261120
    %v80 = vsel %vm78, %v68, 0
    %v83 = vsel %vm78, %v69, 0
    %85 = vmatpush.msra.mxu0 0.0
    %86 = vmatpush.msra.mxu0 0.0
    %87 = vmatpush.msra.mxu0 0.0
    %88 = vmatpush.msra.mxu0 0.0
    %89 = vmatpush.msra.mxu0 0.0
    %90 = vmatpush.msra.mxu0 0.0
    %91 = vmatpush.msra.mxu0 0.0
    %92 = vmatpush.msra.mxu0 0.0
    %93 = vmatpush.msra.mxu0 0.0
    %94 = vmatpush.msra.mxu0 0.0
    %95 = vmatpush.msra.mxu0 0.0
    %96 = vmatpush.msra.mxu0 0.0
    %97 = vmatpush.msra.mxu0 %v73
    %98 = vmatpush.msra.mxu0 %v72
    %99 = vmatpush.msra.mxu0 %v71
    %100 = vmatpush.msra.mxu0 %v70
    %101 = vmatmul.f32.gmra.mxu0 %v80
    %v102 = vpop.f32.mrf.mxu0
    %v103 = vadd.f32 %v76, %v102
    %104 = vmatmul.f32.gmra.mxu0 %v83
    %v105 = vpop.f32.mrf.mxu0
    %v106 = vadd.f32 %v76, %v105
    %107 = vdwg.mxu0
    %v108 = vmax.f32 %v103, 0.0
    %v109 = vmax.f32 %v106, 0.0
    %v110 = vld [vmem:[#allocation7] sm:$0xff]
    %v111 = vld [vmem:[#allocation7 + $0x8] sm:$0xff]
    %v112 = vld [vmem:[#allocation7 + $0x10] sm:$0xff]
    %v113 = vld [vmem:[#allocation7 + $0x18] sm:$0xff]
    %v114 = vld [vmem:[%s4] sm:$0x1]
    %v116 = vperm.slane %v114, 0
    %v119 = vsel %vm78, %v108, 0
    %v122 = vsel %vm78, %v109, 0
    %124 = vmatpush.msra.mxu0 0.0
    %125 = vmatpush.msra.mxu0 0.0
    %126 = vmatpush.msra.mxu0 0.0
    %127 = vmatpush.msra.mxu0 0.0
    %128 = vmatpush.msra.mxu0 0.0
    %129 = vmatpush.msra.mxu0 0.0
    %130 = vmatpush.msra.mxu0 0.0
    %131 = vmatpush.msra.mxu0 0.0
    %132 = vmatpush.msra.mxu0 0.0
    %133 = vmatpush.msra.mxu0 0.0
    %134 = vmatpush.msra.mxu0 0.0
    %135 = vmatpush.msra.mxu0 0.0
    %136 = vmatpush.msra.mxu0 %v113
    %137 = vmatpush.msra.mxu0 %v112
    %138 = vmatpush.msra.mxu0 %v111
    %139 = vmatpush.msra.mxu0 %v110
    %140 = vmatmul.f32.gmra.mxu0 %v119
    %v141 = vpop.f32.mrf.mxu0
    %v142 = vadd.f32 %v116, %v141
    %143 = vmatmul.f32.gmra.mxu0 %v122
    %v144 = vpop.f32.mrf.mxu0
    %v145 = vadd.f32 %v116, %v144
    %146 = vdwg.mxu0
    %v147 = vsel %vm78, %v142, -inf
    %v148 = vrot.slane %v147, 4
    %v149 = vmax.f32 %v147, %v148
    %v150 = vrot.slane %v149, 2
    %v151 = vmax.f32 %v149, %v150
    %v152 = vrot.slane %v151, 1
    %v153 = vmax.f32 %v151, %v152
    %v154 = vsel %vm78, %v145, -inf
    %v155 = vrot.slane %v154, 4
    %v156 = vmax.f32 %v154, %v155
    %v157 = vrot.slane %v156, 2
    %v158 = vmax.f32 %v156, %v157
    %v159 = vrot.slane %v158, 1
    %v160 = vmax.f32 %v158, %v159
    %v161 = vsub.f32 %v142, %v153
    %v162 = vsub.f32 %v145, %v160
    %v163 = vmul.f32 %v161, 1.442695
    %v164 = vpow.pop %v163
    %v165 = vmul.f32 %v162, 1.442695
    %v166 = vpow.pop %v165
    %v167 = vmul.f32 %v164, %v68
    %v168 = vmul.f32 %v166, %v69
    %v169 = vsel %vm78, %v167, 0.0
    %v170 = vrot.slane %v169, 4
    %v171 = vadd.f32 %v169, %v170
    %v172 = vrot.slane %v171, 2
    %v173 = vadd.f32 %v171, %v172
    %v174 = vrot.slane %v173, 1
    %v175 = vadd.f32 %v173, %v174
    %v176 = vsel %vm78, %v168, 0.0
    %v177 = vrot.slane %v176, 4
    %v178 = vadd.f32 %v176, %v177
    %v179 = vrot.slane %v178, 2
    %v180 = vadd.f32 %v178, %v179
    %v181 = vrot.slane %v180, 1
    %v182 = vadd.f32 %v180, %v181
    %v183 = vsel %vm78, %v164, 0.0
    %v184 = vrot.slane %v183, 4
    %v185 = vadd.f32 %v183, %v184
    %v186 = vrot.slane %v185, 2
    %v187 = vadd.f32 %v185, %v186
    %v188 = vrot.slane %v187, 1
    %v189 = vadd.f32 %v187, %v188
    %v190 = vsel %vm78, %v166, 0.0
    %v191 = vrot.slane %v190, 4
    %v192 = vadd.f32 %v190, %v191
    %v193 = vrot.slane %v192, 2
    %v194 = vadd.f32 %v192, %v193
    %v195 = vrot.slane %v194, 1
    %v196 = vadd.f32 %v194, %v195
    %v197 = vrcp.pop %v189
    %v198 = vmul.f32 %v189, %v197
    %v199 = vsub.f32 1.0, %v198
    %v200 = vmul.f32 %v197, %v199
    %v201 = vadd.f32 %v197, %v200
    %vm202 = vweird.f32 %v189
    %vm203 = vweird.f32 %v197
    %vm204 = vmor %vm202, %vm203
    %v205 = vsel %vm204, %v197, %v201
    %v206 = vand.u32 2147483647, %v189
    %vm207 = vcmp.eq.f32.partialorder %v206, 8.507059e+37
    %v208 = vand.u32 %v189, 2147483648
    %v209 = vor.u32 1.1754944e-38, %v208
    %v210 = vsel %vm207, %v209, %v205
    %v211 = vmul.f32 %v175, %v210
    %v212 = vrcp.pop %v196
    %v213 = vmul.f32 %v196, %v212
    %v214 = vsub.f32 1.0, %v213
    %v215 = vmul.f32 %v212, %v214
    %v216 = vadd.f32 %v212, %v215
    %vm217 = vweird.f32 %v196
    %vm218 = vweird.f32 %v212
    %vm219 = vmor %vm217, %vm218
    %v220 = vsel %vm219, %v212, %v216
    %v221 = vand.u32 2147483647, %v196
    %vm222 = vcmp.eq.f32.partialorder %v221, 8.507059e+37
    %v223 = vand.u32 %v196, 2147483648
    %v224 = vor.u32 1.1754944e-38, %v223
    %v225 = vsel %vm222, %v224, %v220
    %v226 = vmul.f32 %v182, %v225
    %vm229 = vcmask 1041409
    %v230 = vsel %vm229, %v226, %v211
    %vm232 = vcmask 254976
    %233 = vst.msk [vmem:[#allocation8] sm:$0x3] %vm232, %v230
    %s234 = scalar_lea.vmem [#allocation7], 32
    %v235 = vld [vmem:[%s234] sm:$0xff]
    %v236 = vld [vmem:[%s234 + $0x8] sm:$0xff]
    %v237 = vld [vmem:[%s234 + $0x10] sm:$0xff]
    %v238 = vld [vmem:[%s234 + $0x18] sm:$0xff]
    %s239 = scalar_lea.vmem %s4, 1
    %v240 = vld [vmem:[%s239] sm:$0x1]
    %v242 = vperm.slane %v240, 0
    %244 = vrot.lane.b32.xlu0 %v108, 96
    %v245 = vpop.permute.xlu0 %244
    %246 = vrot.lane.b32.xlu0 %v109, 96
    %v247 = vpop.permute.xlu0 %246
    %v248 = vsel %vm78, %v245, 0
    %v250 = vsel %vm78, %v247, 0
    %252 = vmatpush.msra.mxu0 0.0
    %253 = vmatpush.msra.mxu0 0.0
    %254 = vmatpush.msra.mxu0 0.0
    %255 = vmatpush.msra.mxu0 0.0
    %256 = vmatpush.msra.mxu0 0.0
    %257 = vmatpush.msra.mxu0 0.0
    %258 = vmatpush.msra.mxu0 0.0
    %259 = vmatpush.msra.mxu0 0.0
    %260 = vmatpush.msra.mxu0 0.0
    %261 = vmatpush.msra.mxu0 0.0
    %262 = vmatpush.msra.mxu0 0.0
    %263 = vmatpush.msra.mxu0 0.0
    %264 = vmatpush.msra.mxu0 %v238
    %265 = vmatpush.msra.mxu0 %v237
    %266 = vmatpush.msra.mxu0 %v236
    %267 = vmatpush.msra.mxu0 %v235
    %268 = vmatmul.f32.gmra.mxu0 %v248
    %v269 = vpop.f32.mrf.mxu0
    %v270 = vadd.f32 %v242, %v269
    %271 = vmatmul.f32.gmra.mxu0 %v250
    %v272 = vpop.f32.mrf.mxu0
    %v273 = vadd.f32 %v242, %v272
    %274 = vdwg.mxu0
    %v275 = vsel %vm78, %v270, -inf
    %v276 = vrot.slane %v275, 4
    %v277 = vmax.f32 %v275, %v276
    %v278 = vrot.slane %v277, 2
    %v279 = vmax.f32 %v277, %v278
    %v280 = vrot.slane %v279, 1
    %v281 = vmax.f32 %v279, %v280
    %v282 = vsel %vm78, %v273, -inf
    %v283 = vrot.slane %v282, 4
    %v284 = vmax.f32 %v282, %v283
    %v285 = vrot.slane %v284, 2
    %v286 = vmax.f32 %v284, %v285
    %v287 = vrot.slane %v286, 1
    %v288 = vmax.f32 %v286, %v287
    %v289 = vsub.f32 %v270, %v281
    %v290 = vsub.f32 %v273, %v288
    %v291 = vmul.f32 %v289, 1.442695
    %v292 = vpow.pop %v291
    %v293 = vmul.f32 %v290, 1.442695
    %v294 = vpow.pop %v293
    %v295 = vmul.f32 %v292, %v68
    %v296 = vmul.f32 %v294, %v69
    %v297 = vsel %vm78, %v295, 0.0
    %v298 = vrot.slane %v297, 4
    %v299 = vadd.f32 %v297, %v298
    %v300 = vrot.slane %v299, 2
    %v301 = vadd.f32 %v299, %v300
    %v302 = vrot.slane %v301, 1
    %v303 = vadd.f32 %v301, %v302
    %v304 = vsel %vm78, %v296, 0.0
    %v305 = vrot.slane %v304, 4
    %v306 = vadd.f32 %v304, %v305
    %v307 = vrot.slane %v306, 2
    %v308 = vadd.f32 %v306, %v307
    %v309 = vrot.slane %v308, 1
    %v310 = vadd.f32 %v308, %v309
    %v311 = vsel %vm78, %v292, 0.0
    %v312 = vrot.slane %v311, 4
    %v313 = vadd.f32 %v311, %v312
    %v314 = vrot.slane %v313, 2
    %v315 = vadd.f32 %v313, %v314
    %v316 = vrot.slane %v315, 1
    %v317 = vadd.f32 %v315, %v316
    %v318 = vsel %vm78, %v294, 0.0
    %v319 = vrot.slane %v318, 4
    %v320 = vadd.f32 %v318, %v319
    %v321 = vrot.slane %v320, 2
    %v322 = vadd.f32 %v320, %v321
    %v323 = vrot.slane %v322, 1
    %v324 = vadd.f32 %v322, %v323
    %v325 = vrcp.pop %v317
    %v326 = vmul.f32 %v317, %v325
    %v327 = vsub.f32 1.0, %v326
    %v328 = vmul.f32 %v325, %v327
    %v329 = vadd.f32 %v325, %v328
    %vm330 = vweird.f32 %v317
    %vm331 = vweird.f32 %v325
    %vm332 = vmor %vm330, %vm331
    %v333 = vsel %vm332, %v325, %v329
    %v334 = vand.u32 2147483647, %v317
    %vm335 = vcmp.eq.f32.partialorder %v334, 8.507059e+37
    %v336 = vand.u32 %v317, 2147483648
    %v337 = vor.u32 1.1754944e-38, %v336
    %v338 = vsel %vm335, %v337, %v333
    %v339 = vmul.f32 %v303, %v338
    %v340 = vrcp.pop %v324
    %v341 = vmul.f32 %v324, %v340
    %v342 = vsub.f32 1.0, %v341
    %v343 = vmul.f32 %v340, %v342
    %v344 = vadd.f32 %v340, %v343
    %vm345 = vweird.f32 %v324
    %vm346 = vweird.f32 %v340
    %vm347 = vmor %vm345, %vm346
    %v348 = vsel %vm347, %v340, %v344
    %v349 = vand.u32 2147483647, %v324
    %vm350 = vcmp.eq.f32.partialorder %v349, 8.507059e+37
    %v351 = vand.u32 %v324, 2147483648
    %v352 = vor.u32 1.1754944e-38, %v351
    %v353 = vsel %vm350, %v352, %v348
    %v354 = vmul.f32 %v310, %v353
    %v357 = vsel %vm229, %v354, %v339
    %358 = vrot.lane.b32.xlu0 %v357, 32
    %v359 = vpop.permute.xlu0 %358
    %vm361 = vcmask 517376
    %362 = vst.msk [vmem:[#allocation8] sm:$0x3] %vm361, %v359
    // Predicated region
    $region34: #{tpu_custom_call.1} parent=1 // pred_check
      _
    $region35: #{tpu_custom_call.1} parent=1 // pred_check_branch
      %364 = sbr.rel (0) target = $region37
    $region36: #{tpu_custom_call.1} parent=1 // pred_region
      %366 = vsyncadd [#allocation4], 0
      %s368 = sshll.u32 [#allocation8], 4
      %s369 = int_to_ptr.vmem [resolvable:$true] %s368
      %s370 = sshll.u32 %s5, 4
      %s371 = int_to_ptr.hbm [resolvable:$true] %s370
      %373 = dma.vmem_to_hbm [thread:$0]  %s369, 32, %s371, [#allocation4]
    $region37: #{tpu_custom_call.1} parent=1 // pred_fallthru
      _
    // Predicated region
    $region38: #{tpu_custom_call.1} parent=1 // pred_check
      _
    $region39: #{tpu_custom_call.1} parent=1 // pred_check_branch
      %375 = sbr.rel (0) target = $region41
    $region40: #{tpu_custom_call.1} parent=1 // pred_region
      %377 = dma.done [#allocation4], 32
    $region41: #{tpu_custom_call.1} parent=1 // pred_fallthru
      _
    %378 = vsyncpa [#allocation3], 1
    %379 = vsyncpa [#allocation6], 1
    %380 = vsyncpa [#allocation4], 1

</llo_original>
